<compile_context>
chip_gen: v7x
topology: tpu7x:2x2x1
jax: 0.10.0
libtpu: 0.0.40
codegen_flags: <defaults>
</compile_context>

<pallas_src>
import functools

import jax
import jax.numpy as jnp
from jax import lax
from jax.experimental import pallas as pl
from jax.experimental.pallas import tpu as pltpu


def _patch_embed_kernel(p_ref, w_ref, b_ref, g_ref, beta_ref, o_ref, *, eps):
    # p_ref:    (1, K, TS)     patch tile: (C_in*k*k) on sublanes, spatial on lanes (bf16)
    # w_ref:    (C_out, K)     conv weight reshaped (C_out, C_in*k*k) (bf16), resident
    # b_ref:    (C_out, 1)     conv bias (f32)
    # g_ref:    (C_out, 1)     layernorm weight (f32)
    # beta_ref: (C_out, 1)     layernorm bias (f32)
    # o_ref:    (1, C_out, TS) output tile (f32), channel-major == NCHW order already
    y = jnp.dot(w_ref[...], p_ref[0], preferred_element_type=jnp.float32)   # (C_out, TS)
    y = y + b_ref[...]
    # Channel-first LayerNorm: stats over the channel (sublane) axis, two-pass variance.
    mean = jnp.mean(y, axis=0, keepdims=True)                               # (1, TS)
    d = y - mean
    var = jnp.mean(d * d, axis=0, keepdims=True)
    y_hat = d * lax.rsqrt(var + eps)
    o_ref[0] = (g_ref[...] * y_hat + beta_ref[...]).astype(o_ref.dtype)


def _im2col_kt(x, k, stride, padding):
    # x: (B, C, H, W) -> (B, C*k*k, H_out*W_out).
    # K ordered (C, kh, kw) to match PyTorch Conv2d weight layout; spatial row-major (h_out, w_out).
    B, C, H, W = x.shape
    if padding > 0:
        x = jnp.pad(x, ((0, 0), (0, 0), (padding, padding), (padding, padding)))
    H_out = (H + 2 * padding - k) // stride + 1
    W_out = (W + 2 * padding - k) // stride + 1
    ii = (jnp.arange(H_out) * stride)[:, None] + jnp.arange(k)[None, :]     # (H_out, k)
    jj = (jnp.arange(W_out) * stride)[:, None] + jnp.arange(k)[None, :]     # (W_out, k)
    # advanced indexing -> (B, C, H_out, kh, W_out, kw)
    p = x[:, :, ii[:, :, None, None], jj[None, None, :, :]]
    # -> (B, C, kh, kw, H_out, W_out) -> (B, K, S)
    p = jnp.transpose(p, (0, 1, 3, 5, 2, 4))
    return p.reshape(B, C * k * k, H_out * W_out), H_out, W_out


def patch_embed_parallel(x, conv_w, conv_b, ln_w, ln_b, *, stride, padding, eps=1e-6,
                         tile_s=2048, compute_dtype=jnp.bfloat16):
    """x: (B, C_in, H, W) f32; conv_w: (C_out, C_in, k, k); returns (B, C_out, H_out, W_out) f32."""
    B, C_in, H, W = x.shape
    C_out, _, k, _ = conv_w.shape

    # bf16 BEFORE im2col: gather/transpose/reshape chain stays at half the bytes.
    patches, H_out, W_out = _im2col_kt(x.astype(compute_dtype), k, stride, padding)
    _, K, S = patches.shape

    # Lane tile over the spatial dim: multiple of 128, shrunk until the grid has >= 8 total
    # steps (>= 4 per TensorCore on v7x) whenever S allows.
    ts = max(128, (int(tile_s) // 128) * 128)
    while ts > 128 and B * pl.cdiv(S, ts) < 8:
        ts //= 2
    S_pad = pl.cdiv(S, ts) * ts
    if S_pad != S:                                   # pad only when a ragged tail exists
        patches = jnp.pad(patches, ((0, 0), (0, 0), (0, S_pad - S)))

    w2d = conv_w.reshape(C_out, C_in * k * k).astype(compute_dtype)         # (C_out, K)
    b2d = conv_b.reshape(C_out, 1).astype(jnp.float32)
    g2d = ln_w.reshape(C_out, 1).astype(jnp.float32)
    beta2d = ln_b.reshape(C_out, 1).astype(jnp.float32)

    kernel = functools.partial(_patch_embed_kernel, eps=eps)

    out = pl.pallas_call(
        kernel,
        out_shape=jax.ShapeDtypeStruct((B, C_out, S_pad), jnp.float32),
        grid_spec=pltpu.PrefetchScalarGridSpec(
            num_scalar_prefetch=0,
            grid=(B, S_pad // ts),
            in_specs=[
                pl.BlockSpec((1, K, ts), lambda b, s: (b, 0, s)),     # patches tile
                pl.BlockSpec((C_out, K), lambda b, s: (0, 0)),        # conv weight (resident)
                pl.BlockSpec((C_out, 1), lambda b, s: (0, 0)),        # conv bias
                pl.BlockSpec((C_out, 1), lambda b, s: (0, 0)),        # ln gamma
                pl.BlockSpec((C_out, 1), lambda b, s: (0, 0)),        # ln beta
            ],
            out_specs=pl.BlockSpec((1, C_out, ts), lambda b, s: (b, 0, s)),
        ),
        compiler_params=pltpu.CompilerParams(
            dimension_semantics=("parallel", "parallel"),
            vmem_limit_bytes=32 * 1024 * 1024),
    )(patches, w2d, b2d, g2d, beta2d)

    if S_pad != S:
        out = out[:, :, :S]                          # drop ragged-tail padding only if present
    return out.reshape(B, C_out, H_out, W_out)       # already NCHW — no transpose needed


def _reference(x, conv_w, conv_b, ln_w, ln_b, *, stride, padding, eps=1e-6,
               compute_dtype=jnp.float32):
    y = lax.conv_general_dilated(
        x.astype(compute_dtype), conv_w.astype(compute_dtype),
        window_strides=(stride, stride),
        padding=((padding, padding), (padding, padding)),
        dimension_numbers=("NCHW", "OIHW", "NCHW"),
        preferred_element_type=jnp.float32)
    y = y + conv_b[None, :, None, None]
    u = jnp.mean(y, axis=1, keepdims=True)
    s = jnp.mean((y - u) ** 2, axis=1, keepdims=True)
    y = (y - u) / jnp.sqrt(s + eps)
    return ln_w[None, :, None, None] * y + ln_b[None, :, None, None]


if __name__ == "__main__":
    # Module config (small): c1=4, c2=32, patch_size=7, stride=4, padding=0.
    c1, c2, patch_size, stride, padding = 4, 32, 7, 4, 0
    B, H, W = 2, 16, 16

    key = jax.random.PRNGKey(0)
    kx, kw, kb = jax.random.split(key, 3)
    x = jax.random.normal(kx, (B, c1, H, W), dtype=jnp.float32)
    conv_w = 0.1 * jax.random.normal(kw, (c2, c1, patch_size, patch_size), dtype=jnp.float32)
    conv_b = 0.05 * jax.random.normal(kb, (c2,), dtype=jnp.float32)
    ln_w = jnp.ones((c2,), dtype=jnp.float32)    # ConvLayerNorm init: ones / zeros
    ln_b = jnp.zeros((c2,), dtype=jnp.float32)

    out = patch_embed_parallel(x, conv_w, conv_b, ln_w, ln_b,
                               stride=stride, padding=padding)
    out = jax.block_until_ready(out)

    H_out = (H - patch_size) // stride + 1
    W_out = (W - patch_size) // stride + 1
    assert out.shape == (B, c2, H_out, W_out), out.shape

    # Parity vs. a reference running the conv with the same compute dtype (bf16 operands,
    # f32 accumulation) — isolates reduction-order differences only.
    ref_bf16 = _reference(x, conv_w, conv_b, ln_w, ln_b, stride=stride, padding=padding,
                          compute_dtype=jnp.bfloat16)
    assert jnp.allclose(out, ref_bf16, atol=2e-3, rtol=2e-3), \
        float(jnp.max(jnp.abs(out - ref_bf16)))

    # Loose sanity check vs. the full-f32 reference (bf16 matmul operands lose ~3 digits).
    ref_f32 = _reference(x, conv_w, conv_b, ln_w, ln_b, stride=stride, padding=padding)
    assert jnp.allclose(out, ref_f32, atol=0.1, rtol=0.1), \
        float(jnp.max(jnp.abs(out - ref_f32)))

    print("KERNEL_OK")
</pallas_src>

<mosaic_0001>
module attributes {stable_mosaic.version = 11 : i64} {
  func.func @_patch_embed_kernel(%arg0: i32, %arg1: i32, %arg2: memref<1x196x128xbf16, #tpu.memory_space<vmem>>, %arg3: memref<32x196xbf16, #tpu.memory_space<vmem>>, %arg4: memref<32x1xf32, #tpu.memory_space<vmem>>, %arg5: memref<32x1xf32, #tpu.memory_space<vmem>>, %arg6: memref<32x1xf32, #tpu.memory_space<vmem>>, %arg7: memref<1x32x128xf32, #tpu.memory_space<vmem>>) attributes {dimension_semantics = [#tpu.dimension_semantics<parallel>, #tpu.dimension_semantics<parallel>], iteration_bounds = array<i64: 2, 1>, scalar_prefetch = 0 : i64, scratch_operands = 0 : i64, tpu.core_type = #tpu.core_type<tc>, window_params = [{transform_indices = @transform_0, window_bounds = array<i64: 1, 196, 128>}, {pipeline_mode = #tpu.pipeline_mode<synchronous>, transform_indices = @transform_1, window_bounds = array<i64: 32, 196>}, {pipeline_mode = #tpu.pipeline_mode<synchronous>, transform_indices = @transform_2, window_bounds = array<i64: 32, 1>}, {pipeline_mode = #tpu.pipeline_mode<synchronous>, transform_indices = @transform_3, window_bounds = array<i64: 32, 1>}, {pipeline_mode = #tpu.pipeline_mode<synchronous>, transform_indices = @transform_4, window_bounds = array<i64: 32, 1>}, {transform_indices = @transform_5, window_bounds = array<i64: 1, 32, 128>}]} {
    %c0 = arith.constant 0 : index
    %c0_0 = arith.constant 0 : index
    %0 = vector.load %arg3[%c0, %c0_0] : memref<32x196xbf16, #tpu.memory_space<vmem>>, vector<32x196xbf16>
    %c0_1 = arith.constant 0 : index
    %c0_2 = arith.constant 0 : index
    %c0_3 = arith.constant 0 : index
    %1 = vector.load %arg2[%c0_1, %c0_2, %c0_3] : memref<1x196x128xbf16, #tpu.memory_space<vmem>>, vector<1x196x128xbf16>
    %2 = vector.shape_cast %1 : vector<1x196x128xbf16> to vector<196x128xbf16>
    %cst = arith.constant dense<0.000000e+00> : vector<32x128xf32>
    %3 = tpu.matmul %0, %2, %cst {dimension_numbers = #tpu.dot_dimension_numbers<[1], [0], [0], [1], [0, 0, 1, 1], [], []>} : vector<32x196xbf16>, vector<196x128xbf16>, vector<32x128xf32> -> vector<32x128xf32>
    %c0_4 = arith.constant 0 : index
    %c0_5 = arith.constant 0 : index
    %4 = vector.load %arg4[%c0_4, %c0_5] : memref<32x1xf32, #tpu.memory_space<vmem>>, vector<32x1xf32>
    %5 = vector.broadcast %4 : vector<32x1xf32> to vector<32x128xf32>
    %6 = arith.addf %3, %5 : vector<32x128xf32>
    %cst_6 = arith.constant dense<0.000000e+00> : vector<128xf32>
    %7 = vector.multi_reduction <add>, %6, %cst_6 [0] : vector<32x128xf32> to vector<128xf32>
    %8 = vector.shape_cast %7 : vector<128xf32> to vector<1x128xf32>
    %cst_7 = arith.constant 3.200000e+01 : f32
    %9 = vector.broadcast %cst_7 : f32 to vector<1x128xf32>
    %10 = arith.divf %8, %9 : vector<1x128xf32>
    %11 = vector.broadcast %10 : vector<1x128xf32> to vector<32x128xf32>
    %12 = arith.subf %6, %11 : vector<32x128xf32>
    %13 = arith.mulf %12, %12 : vector<32x128xf32>
    %cst_8 = arith.constant dense<0.000000e+00> : vector<128xf32>
    %14 = vector.multi_reduction <add>, %13, %cst_8 [0] : vector<32x128xf32> to vector<128xf32>
    %15 = vector.shape_cast %14 : vector<128xf32> to vector<1x128xf32>
    %cst_9 = arith.constant 3.200000e+01 : f32
    %16 = vector.broadcast %cst_9 : f32 to vector<1x128xf32>
    %17 = arith.divf %15, %16 : vector<1x128xf32>
    %cst_10 = arith.constant 9.99999997E-7 : f32
    %18 = vector.broadcast %cst_10 : f32 to vector<1x128xf32>
    %19 = arith.addf %17, %18 : vector<1x128xf32>
    %20 = math.rsqrt %19 : vector<1x128xf32>
    %21 = vector.broadcast %20 : vector<1x128xf32> to vector<32x128xf32>
    %22 = arith.mulf %12, %21 : vector<32x128xf32>
    %c0_11 = arith.constant 0 : index
    %c0_12 = arith.constant 0 : index
    %23 = vector.load %arg5[%c0_11, %c0_12] : memref<32x1xf32, #tpu.memory_space<vmem>>, vector<32x1xf32>
    %24 = vector.broadcast %23 : vector<32x1xf32> to vector<32x128xf32>
    %25 = arith.mulf %24, %22 : vector<32x128xf32>
    %c0_13 = arith.constant 0 : index
    %c0_14 = arith.constant 0 : index
    %26 = vector.load %arg6[%c0_13, %c0_14] : memref<32x1xf32, #tpu.memory_space<vmem>>, vector<32x1xf32>
    %27 = vector.broadcast %26 : vector<32x1xf32> to vector<32x128xf32>
    %28 = arith.addf %25, %27 : vector<32x128xf32>
    %c0_15 = arith.constant 0 : index
    %c0_16 = arith.constant 0 : index
    %c0_17 = arith.constant 0 : index
    %29 = vector.load %arg7[%c0_15, %c0_16, %c0_17] : memref<1x32x128xf32, #tpu.memory_space<vmem>>, vector<1x32x128xf32>
    %30 = vector.shape_cast %29 : vector<1x32x128xf32> to vector<32x128xf32>
    %31 = vector.shape_cast %28 : vector<32x128xf32> to vector<1x32x128xf32>
    tpu.vector_store %arg7[%c0_15, %c0_16, %c0_17], %31 {strides = array<i32>} : memref<1x32x128xf32, #tpu.memory_space<vmem>>, vector<1x32x128xf32>,
    return
  }
  func.func @transform_0(%arg0: i32, %arg1: i32) -> (i32, i32, i32) {
    %c0_i32 = arith.constant 0 : i32
    %c0_i32_0 = arith.constant 0 : i32
    return %arg0, %c0_i32, %arg1 : i32, i32, i32
  }
  func.func @transform_1(%arg0: i32, %arg1: i32) -> (i32, i32) {
    %c0_i32 = arith.constant 0 : i32
    %c0_i32_0 = arith.constant 0 : i32
    %c0_i32_1 = arith.constant 0 : i32
    return %c0_i32, %c0_i32_0 : i32, i32
  }
  func.func @transform_2(%arg0: i32, %arg1: i32) -> (i32, i32) {
    %c0_i32 = arith.constant 0 : i32
    %c0_i32_0 = arith.constant 0 : i32
    %c0_i32_1 = arith.constant 0 : i32
    return %c0_i32, %c0_i32_0 : i32, i32
  }
  func.func @transform_3(%arg0: i32, %arg1: i32) -> (i32, i32) {
    %c0_i32 = arith.constant 0 : i32
    %c0_i32_0 = arith.constant 0 : i32
    %c0_i32_1 = arith.constant 0 : i32
    return %c0_i32, %c0_i32_0 : i32, i32
  }
  func.func @transform_4(%arg0: i32, %arg1: i32) -> (i32, i32) {
    %c0_i32 = arith.constant 0 : i32
    %c0_i32_0 = arith.constant 0 : i32
    %c0_i32_1 = arith.constant 0 : i32
    return %c0_i32, %c0_i32_0 : i32, i32
  }
  func.func @transform_5(%arg0: i32, %arg1: i32) -> (i32, i32, i32) {
    %c0_i32 = arith.constant 0 : i32
    %c0_i32_0 = arith.constant 0 : i32
    return %arg0, %c0_i32, %arg1 : i32, i32, i32
  }
}

</mosaic_0001>

<llo_original>
// kernel: tpu_custom_call.1
$region0: #{tpu_custom_call.1}
  #allocation0 [shape = 'u32[]', space=smem, size = 0x4, offset = 0x4, fixed_abs, tag = 'smem constant byte address 0x4 - core index']
  #allocation1 [shape = 'u32[144,128]{1,0:T(1,128)}', space=vmem, size = 0x12000, scoped, tag = 'internal scratch']
  %s0 = inlined_call_operand.vmem [shape: bf16[2,196,128], index: 0, kind: input, shape index: {}]
  %s1 = inlined_call_operand.vmem [shape: bf16[32,196], index: 1, kind: input, shape index: {}]
  %s2 = inlined_call_operand.vmem [shape: f32[32,1], index: 2, kind: input, shape index: {}]
  %s3 = inlined_call_operand.vmem [shape: f32[32,1], index: 3, kind: input, shape index: {}]
  %s4 = inlined_call_operand.vmem [shape: f32[32,1], index: 4, kind: input, shape index: {}]
  %s5 = inlined_call_operand.hbm [shape: f32[2,32,128], index: 5, kind: output, shape index: {}]
  %s6 = sld [smem:[#allocation0]]
  $region53: #{tpu_custom_call.1} parent=0
    _
  %s8 = ssub.s32 1, %s6
  %s9 = scalar_select 0, %s8, %s6
  $region1: #{tpu_custom_call.1} parent=0
    #allocation2 [shape = 'u8[32768]{0}', space=vmem, size = 0x8000, scoped, tag = 'output window, operand 0']
    #allocation3 [shape = 's32[2]{0}', space=sflag, size = 0x8, scoped, tag = 'scoped memory for tpu_custom_call.1']
    %10 = vsyncpa [#allocation3], 0
    %s11 = scalar_lea.sflag [#allocation3], 1
    %12 = vsyncpa %s11, 0
    loop: start=0, step=1, limit=4
    $region2: #{tpu_custom_call.1} parent=1 // loop_pre_header
      _
    $region3: #{tpu_custom_call.1} parent=1 // loop_header
      %s14 = sphi 0, %s18
      %p15 = scmp.ge.s32.totalorder %s14, 4
      %s21 = sphi 0, %s33
      %s22 = sphi 0, %s29
      %s23 = sphi 0, %s21
      %s24 = sphi 0, %s22
      %s25 = sphi 0, %s23
      %s26 = sphi 0, %s24
      %s38 = sphi 0, %s40
      %s41 = sphi 0, %s38
      %s42 = sphi 0, %s41
      %s58 = sphi 0, %s42
      %s62 = sphi 0, %s62
      %s64 = sphi 0, %s62
      %s65 = sphi 0, %s64
      %s79 = sphi 0, %s65
      %s83 = sphi 0, %s83
      %s85 = sphi 0, %s83
      %s86 = sphi 0, %s85
      %s100 = sphi 0, %s86
      %s104 = sphi 0, %s104
      %s106 = sphi 0, %s104
      %s107 = sphi 0, %s106
      %s121 = sphi 0, %s107
      %s125 = sphi 0, %s125
      %s127 = sphi 0, %s125
      %s128 = sphi 0, %s127
      %s142 = sphi 0, %s128
      %s150 = sphi 0, %s152
      %s153 = sphi 0, %s150
      %s154 = sphi 0, %s153
      %s170 = sphi 0, %s154
    $region4: #{tpu_custom_call.1} parent=1 // loop_header_branch
      %17 = sbr.rel (%p15) target = $region8
    $region5: #{tpu_custom_call.1} parent=1 // loop_body
      %s19 = ssub.s32 %s14, 1
      %s20 = ssub.s32 %s14, 2
      %s27 = sadd.s32 1, %s22
      %p28 = scmp.ge.s32.totalorder %s27, 1
      %s29 = scalar_select %p28, 0, %s27
      %s30 = sadd.s32 1, %s21
      %s31 = scalar_select %p28, %s30, %s21
      %p32 = scmp.ge.s32.totalorder %s31, 2
      %s33 = scalar_select %p32, 0, %s31
      %s34 = ssub.s32 %s21, %s33
      %s35 = ssub.s32 %s22, %s29
      %s36 = sor.u32 %s34, %s35
      %p37 = scmp.eq.s32.totalorder %s36, 0
      %s39 = sadd.s32 %s38, 1
      %s40 = scalar_select %p37, %s38, %s39
      %p43 = pneg %p37
      %p44 = scmp.eq.s32.totalorder %s14, 1
      %p45 = por %p43, %p44
      %p46 = scmp.ne.s32.totalorder %s38, %s41
      %p47 = scmp.eq.s32.totalorder %s14, 0
      %p48 = por %p46, %p47
      %p49 = scmp.ne.s32.totalorder %s38, %s41
      %p50 = scmp.eq.s32.totalorder %s19, 1
      %p51 = por %p49, %p50
      %p52 = scmp.ne.s32.totalorder %s41, %s42
      %p53 = scmp.eq.s32.totalorder %s19, 0
      %p54 = por %p52, %p53
      %p55 = scmp.ne.s32.totalorder %s41, %s42
      %p56 = scmp.eq.s32.totalorder %s20, 1
      %p57 = por %p55, %p56
      %p59 = scmp.ne.s32.totalorder %s42, %s58
      %p60 = scmp.eq.s32.totalorder %s20, 0
      %p61 = por %p59, %p60
      %s63 = sadd.s32 %s62, 1
      %p66 = scmp.eq.s32.totalorder %s14, 1
      %p67 = scmp.ne.s32.totalorder %s62, %s64
      %p68 = scmp.eq.s32.totalorder %s14, 0
      %p69 = por %p67, %p68
      %p70 = scmp.ne.s32.totalorder %s62, %s64
      %p71 = scmp.eq.s32.totalorder %s19, 1
      %p72 = por %p70, %p71
      %p73 = scmp.ne.s32.totalorder %s64, %s65
      %p74 = scmp.eq.s32.totalorder %s19, 0
      %p75 = por %p73, %p74
      %p76 = scmp.ne.s32.totalorder %s64, %s65
      %p77 = scmp.eq.s32.totalorder %s20, 1
      %p78 = por %p76, %p77
      %p80 = scmp.ne.s32.totalorder %s65, %s79
      %p81 = scmp.eq.s32.totalorder %s20, 0
      %p82 = por %p80, %p81
      %s84 = sadd.s32 %s83, 1
      %p87 = scmp.eq.s32.totalorder %s14, 1
      %p88 = scmp.ne.s32.totalorder %s83, %s85
      %p89 = scmp.eq.s32.totalorder %s14, 0
      %p90 = por %p88, %p89
      %p91 = scmp.ne.s32.totalorder %s83, %s85
      %p92 = scmp.eq.s32.totalorder %s19, 1
      %p93 = por %p91, %p92
      %p94 = scmp.ne.s32.totalorder %s85, %s86
      %p95 = scmp.eq.s32.totalorder %s19, 0
      %p96 = por %p94, %p95
      %p97 = scmp.ne.s32.totalorder %s85, %s86
      %p98 = scmp.eq.s32.totalorder %s20, 1
      %p99 = por %p97, %p98
      %p101 = scmp.ne.s32.totalorder %s86, %s100
      %p102 = scmp.eq.s32.totalorder %s20, 0
      %p103 = por %p101, %p102
      %s105 = sadd.s32 %s104, 1
      %p108 = scmp.eq.s32.totalorder %s14, 1
      %p109 = scmp.ne.s32.totalorder %s104, %s106
      %p110 = scmp.eq.s32.totalorder %s14, 0
      %p111 = por %p109, %p110
      %p112 = scmp.ne.s32.totalorder %s104, %s106
      %p113 = scmp.eq.s32.totalorder %s19, 1
      %p114 = por %p112, %p113
      %p115 = scmp.ne.s32.totalorder %s106, %s107
      %p116 = scmp.eq.s32.totalorder %s19, 0
      %p117 = por %p115, %p116
      %p118 = scmp.ne.s32.totalorder %s106, %s107
      %p119 = scmp.eq.s32.totalorder %s20, 1
      %p120 = por %p118, %p119
      %p122 = scmp.ne.s32.totalorder %s107, %s121
      %p123 = scmp.eq.s32.totalorder %s20, 0
      %p124 = por %p122, %p123
      %s126 = sadd.s32 %s125, 1
      %p129 = scmp.eq.s32.totalorder %s14, 1
      %p130 = scmp.ne.s32.totalorder %s125, %s127
      %p131 = scmp.eq.s32.totalorder %s14, 0
      %p132 = por %p130, %p131
      %p133 = scmp.ne.s32.totalorder %s125, %s127
      %p134 = scmp.eq.s32.totalorder %s19, 1
      %p135 = por %p133, %p134
      %p136 = scmp.ne.s32.totalorder %s127, %s128
      %p137 = scmp.eq.s32.totalorder %s19, 0
      %p138 = por %p136, %p137
      %p139 = scmp.ne.s32.totalorder %s127, %s128
      %p140 = scmp.eq.s32.totalorder %s20, 1
      %p141 = por %p139, %p140
      %p143 = scmp.ne.s32.totalorder %s128, %s142
      %p144 = scmp.eq.s32.totalorder %s20, 0
      %p145 = por %p143, %p144
      %s146 = ssub.s32 %s21, %s33
      %s147 = ssub.s32 %s22, %s29
      %s148 = sor.u32 %s146, %s147
      %p149 = scmp.eq.s32.totalorder %s148, 0
      %s151 = sadd.s32 %s150, 1
      %s152 = scalar_select %p149, %s150, %s151
      %p155 = pneg %p149
      %p156 = scmp.eq.s32.totalorder %s14, 1
      %p157 = por %p155, %p156
      %p158 = scmp.ne.s32.totalorder %s150, %s153
      %p159 = scmp.eq.s32.totalorder %s14, 0
      %p160 = por %p158, %p159
      %p161 = scmp.ne.s32.totalorder %s150, %s153
      %p162 = scmp.eq.s32.totalorder %s19, 1
      %p163 = por %p161, %p162
      %p164 = scmp.ne.s32.totalorder %s153, %s154
      %p165 = scmp.eq.s32.totalorder %s19, 0
      %p166 = por %p164, %p165
      %p167 = scmp.ne.s32.totalorder %s153, %s154
      %p168 = scmp.eq.s32.totalorder %s20, 1
      %p169 = por %p167, %p168
      %p171 = scmp.ne.s32.totalorder %s154, %s170
      %p172 = scmp.eq.s32.totalorder %s20, 0
      %p173 = por %p171, %p172
      %p174 = scmp.le.s32.totalorder 1, %s14
      %p175 = scmp.lt.s32.totalorder %s14, 3
      %p176 = pnand %p174, %p175
      %p177 = pneg %p176
      // Predicated region
      $region9: #{tpu_custom_call.1} parent=5 // pred_check
        _
      $region10: #{tpu_custom_call.1} parent=5 // pred_check_branch
        %179 = sbr.rel (%p176) target = $region12
      $region11: #{tpu_custom_call.1} parent=5 // pred_region
        %s180 = ssub.s32 %s14, 1
        // Predicated region
        $region13: #{tpu_custom_call.1} parent=11 // pred_check
          %p181 = pneg %p75
        $region14: #{tpu_custom_call.1} parent=11 // pred_check_branch
          %183 = sbr.rel (%p181) target = $region16
        $region15: #{tpu_custom_call.1} parent=11 // pred_region
          _
        $region16: #{tpu_custom_call.1} parent=11 // pred_fallthru
          _
        // Predicated region
        $region17: #{tpu_custom_call.1} parent=11 // pred_check
          %p184 = pneg %p96
        $region18: #{tpu_custom_call.1} parent=11 // pred_check_branch
          %186 = sbr.rel (%p184) target = $region20
        $region19: #{tpu_custom_call.1} parent=11 // pred_region
          _
        $region20: #{tpu_custom_call.1} parent=11 // pred_fallthru
          _
        // Predicated region
        $region21: #{tpu_custom_call.1} parent=11 // pred_check
          %p187 = pneg %p117
        $region22: #{tpu_custom_call.1} parent=11 // pred_check_branch
          %189 = sbr.rel (%p187) target = $region24
        $region23: #{tpu_custom_call.1} parent=11 // pred_region
          _
        $region24: #{tpu_custom_call.1} parent=11 // pred_fallthru
          _
        // Predicated region
        $region25: #{tpu_custom_call.1} parent=11 // pred_check
          %p190 = pneg %p138
        $region26: #{tpu_custom_call.1} parent=11 // pred_check_branch
          %192 = sbr.rel (%p190) target = $region28
        $region27: #{tpu_custom_call.1} parent=11 // pred_region
          _
        $region28: #{tpu_custom_call.1} parent=11 // pred_fallthru
          _
      $region12: #{tpu_custom_call.1} parent=5 // pred_fallthru
        _
      %p193 = scmp.lt.s32.totalorder %s14, 2
      // Predicated region
      $region29: #{tpu_custom_call.1} parent=5 // pred_check
        %p194 = pneg %p193
      $region30: #{tpu_custom_call.1} parent=5 // pred_check_branch
        %196 = sbr.rel (%p194) target = $region32
      $region31: #{tpu_custom_call.1} parent=5 // pred_region
        // Predicated region
        $region33: #{tpu_custom_call.1} parent=31 // pred_check
          %p197 = pneg %p48
        $region34: #{tpu_custom_call.1} parent=31 // pred_check_branch
          %199 = sbr.rel (%p197) target = $region36
        $region35: #{tpu_custom_call.1} parent=31 // pred_region
          %p200 = scmp.lt.s32.totalorder %s21, 1
          %s201 = scalar_select %p200, %s21, 1
          %p202 = scmp.lt.s32.totalorder %s22, 0
          %s203 = scalar_select %p202, %s22, 0
          %s204 = smul.addr %s201, 25
          %s205 = sadd.s32 %s203, %s204
          %s206 = smul.addr %s205, 4
          %s207 = scalar_lea.vmem %s0, %s206
        $region36: #{tpu_custom_call.1} parent=31 // pred_fallthru
          _
      $region32: #{tpu_custom_call.1} parent=5 // pred_fallthru
        _
      %p208 = scmp.le.s32.totalorder 1, %s14
      %p209 = scmp.lt.s32.totalorder %s14, 3
      %p210 = pnand %p208, %p209
      %p211 = pneg %p210
      // Predicated region
      $region37: #{tpu_custom_call.1} parent=5 // pred_check
        _
      $region38: #{tpu_custom_call.1} parent=5 // pred_check_branch
        %213 = sbr.rel (%p210) target = $region40
      $region39: #{tpu_custom_call.1} parent=5 // pred_region
        %s214 = ssub.s32 %s14, 1
        %p215 = scmp.lt.s32.totalorder %s23, 1
        %s216 = scalar_select %p215, %s23, 1
        %p217 = scmp.lt.s32.totalorder %s24, 0
        %s218 = scalar_select %p217, %s24, 0
        %s219 = smul.addr %s216, 25
        %s220 = sadd.s32 %s218, %s219
        %s221 = smul.addr %s220, 4
        %s222 = scalar_lea.vmem %s0, %s221
        %p223 = pneg %p54
        %p224 = pneg %p51
        %p225 = pneg %p75
        %p226 = pneg %p72
        %p227 = pneg %p96
        %p228 = pneg %p93
        %p229 = pneg %p117
        %p230 = pneg %p114
        %p231 = pneg %p138
        %p232 = pneg %p135
        %p233 = pneg %p166
        %p234 = pneg %p163
        %s235 = sand.u32 %s153, 1
        %s236 = scalar_lea.sflag [#allocation3], %s235
        %s237 = sand.u32 %s153, 1
        %s238 = smul.addr %s237, 32
        %s239 = scalar_lea.vmem [#allocation2], %s238
        %p240 = scmp.lt.s32.totalorder %s23, 1
        %s241 = scalar_select %p240, %s23, 1
        %p242 = scmp.lt.s32.totalorder %s24, 0
        %s243 = scalar_select %p242, %s24, 0
        %s244 = smul.addr %s241, 25
        %s245 = sadd.s32 %s243, %s244
        %s246 = smul.addr %s245, 4
        %s247 = scalar_lea.vmem %s0, %s246
        %v249 = vld [vmem:[%s1] sm:$0xff]
        %v250 = vld [vmem:[%s1 + $0x8] sm:$0xff]
        %v251 = vld [vmem:[%s1 + $0x10] sm:$0xff]
        %v252 = vld [vmem:[%s1 + $0x18] sm:$0xff]
        %v253 = vld [vmem:[%s247] sm:$0xf]
        %v254 = vld [vmem:[%s247 + $0x4] sm:$0xf]
        %v255 = vld [vmem:[%s247 + $0x8] sm:$0xf]
        %v256 = vld [vmem:[%s247 + $0xc] sm:$0xf]
        %v257 = vld [vmem:[%s247 + $0x10] sm:$0xf]
        %v258 = vld [vmem:[%s247 + $0x14] sm:$0xf]
        %v259 = vld [vmem:[%s247 + $0x18] sm:$0xf]
        %v260 = vld [vmem:[%s247 + $0x1c] sm:$0xf]
        %v261 = vld [vmem:[%s247 + $0x20] sm:$0xf]
        %v262 = vld [vmem:[%s247 + $0x24] sm:$0xf]
        %v263 = vld [vmem:[%s247 + $0x28] sm:$0xf]
        %v264 = vld [vmem:[%s247 + $0x2c] sm:$0xf]
        %v265 = vld [vmem:[%s247 + $0x30] sm:$0xf]
        %v266 = vld [vmem:[%s247 + $0x34] sm:$0xf]
        %v267 = vld [vmem:[%s247 + $0x38] sm:$0xf]
        %v268 = vld [vmem:[%s247 + $0x3c] sm:$0xf]
        %v269 = vld [vmem:[%s247 + $0x40] sm:$0xf]
        %v270 = vld [vmem:[%s247 + $0x44] sm:$0xf]
        %v271 = vld [vmem:[%s247 + $0x48] sm:$0xf]
        %v272 = vld [vmem:[%s247 + $0x4c] sm:$0xf]
        %v273 = vld [vmem:[%s247 + $0x50] sm:$0xf]
        %v274 = vld [vmem:[%s247 + $0x54] sm:$0xf]
        %v275 = vld [vmem:[%s247 + $0x58] sm:$0xf]
        %v276 = vld [vmem:[%s247 + $0x5c] sm:$0xf]
        %v277 = vld [vmem:[%s247 + $0x60] sm:$0x3]
        %v278 = vld [vmem:[%s2] sm:$0xff]
        %v279 = vld [vmem:[%s2 + $0x8] sm:$0xff]
        %v280 = vld [vmem:[%s2 + $0x10] sm:$0xff]
        %v281 = vld [vmem:[%s2 + $0x18] sm:$0xff]
        %283 = vset.pattern.permute.xlu0 0
        %284 = vperm.xlu0 %283, %v278
        %v285 = vpop.permute.xlu0 %284
        %288 = vset.pattern.permute.xlu0 0
        %289 = vperm.xlu0 %288, %v279
        %v290 = vpop.permute.xlu0 %289
        %293 = vset.pattern.permute.xlu0 0
        %294 = vperm.xlu0 %293, %v280
        %v295 = vpop.permute.xlu0 %294
        %298 = vset.pattern.permute.xlu0 0
        %299 = vperm.xlu0 %298, %v281
        %v300 = vpop.permute.xlu0 %299
        %v306 = vunpack.c.l.b16 %v249
        %v307 = vunpack.c.h.b16 %v249
        %v308 = vunpack.c.l.b16 %v250
        %v309 = vunpack.c.h.b16 %v250
        %v310 = vunpack.c.l.b16 %v251
        %v311 = vunpack.c.h.b16 %v251
        %v312 = vunpack.c.l.b16 %v252
        %v313 = vunpack.c.h.b16 %v252
        %v314 = vpack.c.b16 %v308, %v306
        %v315 = vpack.c.b16 %v309, %v307
        %v316 = vpack.c.b16 %v312, %v310
        %v317 = vpack.c.b16 %v313, %v311
        %v345 = vunpack.c.l.b16 %v253
        %v346 = vunpack.c.l.b16 %v254
        %v347 = vunpack.c.l.b16 %v255
        %v348 = vunpack.c.l.b16 %v256
        %v349 = vunpack.c.l.b16 %v257
        %v350 = vunpack.c.l.b16 %v258
        %v351 = vunpack.c.l.b16 %v259
        %v352 = vunpack.c.l.b16 %v260
        %v353 = vunpack.c.l.b16 %v261
        %v354 = vunpack.c.l.b16 %v262
        %v355 = vunpack.c.l.b16 %v263
        %v356 = vunpack.c.l.b16 %v264
        %v357 = vunpack.c.l.b16 %v265
        %v358 = vunpack.c.l.b16 %v266
        %v359 = vunpack.c.l.b16 %v267
        %v360 = vunpack.c.l.b16 %v268
        %v361 = vunpack.c.l.b16 %v269
        %v362 = vunpack.c.l.b16 %v270
        %v363 = vunpack.c.l.b16 %v271
        %v364 = vunpack.c.l.b16 %v272
        %v365 = vunpack.c.l.b16 %v273
        %v366 = vunpack.c.l.b16 %v274
        %v367 = vunpack.c.l.b16 %v275
        %v368 = vunpack.c.l.b16 %v276
        %v369 = vunpack.c.l.b16 %v277
        %v370 = vpack.c.b16 %v346, %v345
        %v371 = vpack.c.b16 %v348, %v347
        %v372 = vpack.c.b16 %v350, %v349
        %v373 = vpack.c.b16 %v352, %v351
        %v374 = vpack.c.b16 %v354, %v353
        %v375 = vpack.c.b16 %v356, %v355
        %v376 = vpack.c.b16 %v358, %v357
        %v377 = vpack.c.b16 %v360, %v359
        %v378 = vpack.c.b16 %v362, %v361
        %v379 = vpack.c.b16 %v364, %v363
        %v380 = vpack.c.b16 %v366, %v365
        %v381 = vpack.c.b16 %v368, %v367
        %v382 = vpack.c.b16 %v369, %v369
        %vm395 = vcmask 556032
        %v397 = vsel %vm395, %v315, 0
        %v400 = vsel %vm395, %v317, 0
        %vm402 = vcmask 1041408
        %v404 = vsel %vm402, %v382, 0
        %406 = vmatprep.subr.bf16.mxu0 0
        %407 = vmatpush1.bf16.msra.mxu0 %v370
        %408 = vmatprep.subr.bf16.mxu0 0
        %409 = vmatpush1.bf16.msra.mxu0 %v371
        %410 = vmatprep.subr.bf16.mxu0 0
        %411 = vmatpush1.bf16.msra.mxu0 %v372
        %412 = vmatprep.subr.bf16.mxu0 0
        %413 = vmatpush1.bf16.msra.mxu0 %v373
        %414 = vmatprep.subr.bf16.mxu0 0
        %415 = vmatpush1.bf16.msra.mxu0 %v374
        %416 = vmatprep.subr.bf16.mxu0 0
        %417 = vmatpush1.bf16.msra.mxu0 %v375
        %418 = vmatprep.subr.bf16.mxu0 0
        %419 = vmatpush1.bf16.msra.mxu0 %v376
        %420 = vmatprep.subr.bf16.mxu0 0
        %421 = vmatpush1.bf16.msra.mxu0 %v377
        %422 = vmatprep.subr.bf16.mxu0 0
        %423 = vmatpush1.bf16.msra.mxu0 %v378
        %424 = vmatprep.subr.bf16.mxu0 0
        %425 = vmatpush1.bf16.msra.mxu0 %v379
        %426 = vmatprep.subr.bf16.mxu0 0
        %427 = vmatpush1.bf16.msra.mxu0 %v380
        %428 = vmatprep.subr.bf16.mxu0 0
        %429 = vmatpush1.bf16.msra.mxu0 %v381
        %430 = vmatprep.subr.bf16.mxu0 0
        %431 = vmatpush1.bf16.msra.mxu0 %v404
        %432 = vmatprep.subr.bf16.mxu0 0
        %433 = vmatpush1.bf16.msra.mxu0 0
        %434 = vmatprep.subr.bf16.mxu0 0
        %435 = vmatpush1.bf16.msra.mxu0 0
        %436 = vmatprep.subr.bf16.mxu0 0
        %437 = vmatpush1.bf16.msra.mxu0 0
        %438 = vmatprep.mubr.bf16.mxu0 %v397
        %439 = vmatmul.mubr.bf16.gmra.mrb[0].mxu0 %v314
        %v440 = vpop.f32.mrb[0].mxu0
        %v441 = vadd.f32 %v285, %v440
        %v442 = vpop.f32.mrb[0].mxu0
        %v443 = vpop.f32.mrb[0].mxu0
        %v444 = vadd.f32 %v290, %v443
        %v445 = vpop.f32.mrb[0].mxu0
        %446 = vmatprep.mubr.bf16.mxu0 %v400
        %447 = vmatmul.mubr.bf16.gmra.mrb[0].mxu0 %v316
        %v448 = vpop.f32.mrb[0].mxu0
        %v449 = vadd.f32 %v295, %v448
        %v450 = vpop.f32.mrb[0].mxu0
        %v451 = vpop.f32.mrb[0].mxu0
        %v452 = vadd.f32 %v300, %v451
        %v453 = vpop.f32.mrb[0].mxu0
        %454 = vdwg.mxu0
        %v455 = vadd.f32 %v441, %v444
        %v456 = vadd.f32 %v455, %v449
        %v457 = vadd.f32 %v456, %v452
        %v458 = vrot.slane %v457, 4
        %v459 = vadd.f32 %v457, %v458
        %v460 = vrot.slane %v459, 2
        %v461 = vadd.f32 %v459, %v460
        %v462 = vrot.slane %v461, 1
        %v463 = vadd.f32 %v461, %v462
        %v464 = vrcp.pop 32.0
        %v465 = vmul.f32 %v463, %v464
        %v466 = vsub.f32 %v441, %v465
        %v467 = vsub.f32 %v444, %v465
        %v468 = vsub.f32 %v449, %v465
        %v469 = vsub.f32 %v452, %v465
        %v470 = vmul.f32 %v466, %v466
        %v471 = vmul.f32 %v467, %v467
        %v472 = vmul.f32 %v468, %v468
        %v473 = vmul.f32 %v469, %v469
        %v474 = vadd.f32 %v470, %v471
        %v475 = vadd.f32 %v474, %v472
        %v476 = vadd.f32 %v475, %v473
        %v477 = vrot.slane %v476, 4
        %v478 = vadd.f32 %v476, %v477
        %v479 = vrot.slane %v478, 2
        %v480 = vadd.f32 %v478, %v479
        %v481 = vrot.slane %v480, 1
        %v482 = vadd.f32 %v480, %v481
        %v483 = vmul.f32 %v482, %v464
        %v484 = vadd.f32 %v483, 1e-06
        %v485 = vrsqrt.pop %v484
        %v486 = vmul.f32 %v466, %v485
        %v487 = vmul.f32 %v467, %v485
        %v488 = vmul.f32 %v468, %v485
        %v489 = vmul.f32 %v469, %v485
        %v490 = vld [vmem:[%s3] sm:$0xff]
        %v491 = vld [vmem:[%s3 + $0x8] sm:$0xff]
        %v492 = vld [vmem:[%s3 + $0x10] sm:$0xff]
        %v493 = vld [vmem:[%s3 + $0x18] sm:$0xff]
        %495 = vset.pattern.permute.xlu0 0
        %496 = vperm.xlu0 %495, %v490
        %v497 = vpop.permute.xlu0 %496
        %500 = vset.pattern.permute.xlu0 0
        %501 = vperm.xlu0 %500, %v491
        %v502 = vpop.permute.xlu0 %501
        %505 = vset.pattern.permute.xlu0 0
        %506 = vperm.xlu0 %505, %v492
        %v507 = vpop.permute.xlu0 %506
        %510 = vset.pattern.permute.xlu0 0
        %511 = vperm.xlu0 %510, %v493
        %v512 = vpop.permute.xlu0 %511
        %v514 = vmul.f32 %v497, %v486
        %v515 = vmul.f32 %v502, %v487
        %v516 = vmul.f32 %v507, %v488
        %v517 = vmul.f32 %v512, %v489
        %v518 = vld [vmem:[%s4] sm:$0xff]
        %v519 = vld [vmem:[%s4 + $0x8] sm:$0xff]
        %v520 = vld [vmem:[%s4 + $0x10] sm:$0xff]
        %v521 = vld [vmem:[%s4 + $0x18] sm:$0xff]
        %523 = vset.pattern.permute.xlu0 0
        %524 = vperm.xlu0 %523, %v518
        %v525 = vpop.permute.xlu0 %524
        %528 = vset.pattern.permute.xlu0 0
        %529 = vperm.xlu0 %528, %v519
        %v530 = vpop.permute.xlu0 %529
        %533 = vset.pattern.permute.xlu0 0
        %534 = vperm.xlu0 %533, %v520
        %v535 = vpop.permute.xlu0 %534
        %538 = vset.pattern.permute.xlu0 0
        %539 = vperm.xlu0 %538, %v521
        %v540 = vpop.permute.xlu0 %539
        %v542 = vadd.f32 %v514, %v525
        %v543 = vadd.f32 %v515, %v530
        %v544 = vadd.f32 %v516, %v535
        %v545 = vadd.f32 %v517, %v540
        %546 = vst [vmem:[%s239] sm:$0xff] %v542
        %547 = vst [vmem:[%s239 + $0x8] sm:$0xff] %v543
        %548 = vst [vmem:[%s239 + $0x10] sm:$0xff] %v544
        %549 = vst [vmem:[%s239 + $0x18] sm:$0xff] %v545
        %s550 = sand.u32 %s153, 1
        %s551 = scalar_lea.sflag [#allocation3], %s550
        %s552 = sand.u32 %s153, 1
        %s553 = smul.addr %s552, 32
        %s554 = scalar_lea.vmem [#allocation2], %s553
        // Predicated region
        $region41: #{tpu_custom_call.1} parent=39 // pred_check
          %p555 = pneg %p163
        $region42: #{tpu_custom_call.1} parent=39 // pred_check_branch
          %557 = sbr.rel (%p555) target = $region44
        $region43: #{tpu_custom_call.1} parent=39 // pred_region
          %s559 = ssub.s32 512, 512
          %560 = vsyncadd %s551, %s559
          %s561 = smul.addr %s23, 4
          %s562 = sadd.s32 %s24, %s561
          %s563 = smul.addr %s562, 128
          %s564 = scalar_lea.hbm %s5, %s563
          %s565 = sshll.u32 %s554, 4
          %s566 = int_to_ptr.vmem [resolvable:$true] %s565
          %571 = dma.vmem_to_hbm [thread:$0]  %s566, 512, %s564, %s551, 128, 128, 8
        $region44: #{tpu_custom_call.1} parent=39 // pred_fallthru
          _
      $region40: #{tpu_custom_call.1} parent=5 // pred_fallthru
        _
      %p572 = scmp.le.s32.totalorder 2, %s14
      // Predicated region
      $region45: #{tpu_custom_call.1} parent=5 // pred_check
        %p573 = pneg %p572
      $region46: #{tpu_custom_call.1} parent=5 // pred_check_branch
        %575 = sbr.rel (%p573) target = $region48
      $region47: #{tpu_custom_call.1} parent=5 // pred_region
        %s576 = ssub.s32 %s14, 2
        // Predicated region
        $region49: #{tpu_custom_call.1} parent=47 // pred_check
          %p577 = pneg %p169
        $region50: #{tpu_custom_call.1} parent=47 // pred_check_branch
          %579 = sbr.rel (%p577) target = $region52
        $region51: #{tpu_custom_call.1} parent=47 // pred_region
          %s580 = sand.u32 %s154, 1
          %s581 = scalar_lea.sflag [#allocation3], %s580
          %s582 = sand.u32 %s154, 1
          %s583 = smul.addr %s582, 32
          %s584 = scalar_lea.vmem [#allocation2], %s583
          %585 = dma.done %s581, 512
        $region52: #{tpu_custom_call.1} parent=47 // pred_fallthru
          _
      $region48: #{tpu_custom_call.1} parent=5 // pred_fallthru
        _
    $region6: #{tpu_custom_call.1} parent=1 // loop_footer
      %s18 = sadd.s32 1, %s14
    $region7: #{tpu_custom_call.1} parent=1 // loop_footer_branch
      %13 = sbr.rel target = $region3
    $region8: #{tpu_custom_call.1} parent=1 // loop_exit
      _
    %586 = vsyncpa [#allocation3], 1
    %s587 = scalar_lea.sflag [#allocation3], 1
    %588 = vsyncpa %s587, 1

</llo_original>
